<compile_context>
chip_gen: v7x
topology: tpu7x:2x2x1
jax: 0.10.0
libtpu: 0.0.40
codegen_flags: <defaults>
</compile_context>

<pallas_src>
import math

import jax
import jax.numpy as jnp
from jax.experimental import pallas as pl
from jax.experimental.pallas import tpu as pltpu


# --------------------------------------------------------------------------
# kernels
# --------------------------------------------------------------------------
def feat_kernel(x_ref, w1_ref, drs_ref, p1_ref):
    """P1[rows] = (a_scale * D^{-1/2})[rows] * (X[rows] @ W1_pad).

    The column-side normalization (and the adjacency quantization scale) are
    folded here so the aggregation kernels are pure int8-A @ bf16-P matmuls."""
    xw = jnp.dot(x_ref[...], w1_ref[...], preferred_element_type=jnp.float32)
    p1_ref[...] = (drs_ref[...] * xw).astype(p1_ref.dtype)


def layer1_kernel(a_ref, p1_ref, drs_ref, b1_ref, w2_ref, q_ref, acc_ref):
    """acc += A_q[rows, kslab] @ P1[kslab]  (K-axis reduction over Npad)
    epilogue (k==last):
       h = relu(acc + b1)
       Q[rows] = (a_scale * D^{-1/2})[rows] * (h @ W2_pad)   (feeds layer 2)."""
    k = pl.program_id(1)

    @pl.when(k == 0)
    def _():
        acc_ref[...] = jnp.zeros_like(acc_ref)

    a_bf16 = a_ref[...].astype(jnp.bfloat16)          # int8 -> bf16 dequant (VPU, free)
    acc_ref[...] += jnp.dot(a_bf16, p1_ref[...],
                            preferred_element_type=jnp.float32)

    @pl.when(k == pl.num_programs(1) - 1)
    def _():
        h = jnp.maximum(acc_ref[...] + b1_ref[...], jnp.float32(0.0))
        # TODO(synk): training-mode dropout (p=0.5) would need pltpu.prng_seed
        # + pltpu.stateful_bernoulli; eval mode is the identity.
        hw = jnp.dot(h.astype(jnp.bfloat16), w2_ref[...],
                     preferred_element_type=jnp.float32)
        q_ref[...] = (drs_ref[...] * hw).astype(q_ref.dtype)


def layer2_kernel(a_ref, q_ref, b2_ref, o_ref, acc_ref):
    """acc += A_q[rows, kslab] @ Q[kslab]
    epilogue: z = acc + b2 ; log_softmax.  Padded class columns carry bias
    -1e30 -> exp() == 0, so the softmax over the 128 padded lanes equals the
    softmax over the real classes (acc stays f32 the whole way)."""
    k = pl.program_id(1)

    @pl.when(k == 0)
    def _():
        acc_ref[...] = jnp.zeros_like(acc_ref)

    a_bf16 = a_ref[...].astype(jnp.bfloat16)
    acc_ref[...] += jnp.dot(a_bf16, q_ref[...],
                            preferred_element_type=jnp.float32)

    @pl.when(k == pl.num_programs(1) - 1)
    def _():
        z = acc_ref[...] + b2_ref[...]
        m = jnp.max(z, axis=-1, keepdims=True)
        e = jnp.exp(z - m)
        lse = jnp.log(jnp.sum(e, axis=-1, keepdims=True)) + m
        o_ref[...] = z - lse


# --------------------------------------------------------------------------
# wrapper helpers
# --------------------------------------------------------------------------
def _round_up(x, m):
    return ((x + m - 1) // m) * m


def _tpu_vmem_capacity():
    """Physical VMEM per TensorCore; conservative (v7x) fallback if unknown."""
    try:
        info = pltpu.get_tpu_info()
        cap = getattr(info, "vmem_capacity_bytes", None)
        if cap:
            return int(cap)
    except Exception:
        pass
    return 64 << 20


def _block_bytes(shapes_dtypes):
    return sum(math.prod(s) * jnp.dtype(d).itemsize for s, d in shapes_dtypes)


def _k1_block_bytes(tm, tk, hpad, cpad):
    # double-buffered inputs/outputs + single accumulator scratch (kernel 1 is
    # the largest working set of the three kernels).
    return (2 * tm * tk * 1            # A int8
            + 2 * tk * hpad * 2        # P1 bf16
            + 2 * tm * 1 * 4           # drs f32
            + 2 * 1 * hpad * 4         # b1 f32
            + 2 * hpad * cpad * 2      # w2 bf16
            + 2 * tm * cpad * 2        # Q out bf16
            + tm * hpad * 4)           # acc scratch f32


def _pick_tiles(npad, hpad, cpad, budget):
    """Largest (tm, tk) dividing npad whose double-buffered kernel-1 working
    set fits the budget.  Prefers big tm (fewer re-reads of the P1/P2 stream)
    then big tk (longer contiguous A-row DMA)."""
    cands = [c for c in (2048, 1024, 512, 256) if c <= npad and npad % c == 0]
    if not cands:
        cands = [npad]
    best = None
    for tm in cands:
        for tk in cands:
            need = _k1_block_bytes(tm, tk, hpad, cpad)
            if need > budget:
                continue
            score = (tm, tk)
            if best is None or score > best[0]:
                best = (score, tm, tk)
    if best is None:
        c = cands[-1]
        return c, c
    return best[1], best[2]


def _vmem_limit(need_bytes, scoped_cap):
    return int(min(max(need_bytes + (4 << 20), 16 << 20), scoped_cap))


# --------------------------------------------------------------------------
# forward
# --------------------------------------------------------------------------
def gcn_attack_forward(x, edge_index, edge_weight, params):
    """x: [N, nfeat] f32; edge_index: [2, E] i32; edge_weight: [E] f32."""
    N, nfeat = x.shape
    w1, b1, w2, b2 = params["w1"], params["b1"], params["w2"], params["b2"]
    nhid = w1.shape[1]
    nclass = w2.shape[1]

    # ---- padding / tiling policy (generation aware) ------------------------
    pad_base = 256 if N <= 2048 else 512      # larger base -> bigger divisors
    Npad = _round_up(max(N, pad_base), pad_base)
    Fpad = _round_up(max(nfeat, 128), 128)
    Hpad = _round_up(max(nhid, 128), 128)
    Cpad = _round_up(max(nclass, 128), 128)

    vmem_cap = _tpu_vmem_capacity()
    scoped_cap = max(16 << 20, min(int(vmem_cap * 0.85), vmem_cap - (8 << 20)))
    tm, tk = _pick_tiles(Npad, Hpad, Cpad, budget=scoped_cap // 2)

    # ---- glue: degrees (O(E)), row-normalized adjacency built directly as
    #      int8 with a single scale (no f32 N^2 intermediate).
    # NOTE: matches PyG gcn_norm (duplicate edges coalesce by sum; explicit
    # self-loops already present in edge_index are double counted, as before).
    # TODO(synk): genuinely sparse graphs at very large N should use a CSR
    # SpMM via PrefetchScalarGridSpec instead of densification.
    src, dst = edge_index[0], edge_index[1]
    deg = jnp.ones((N,), jnp.float32).at[src].add(edge_weight)   # +1 self loop
    d = jnp.where(deg > 0, jax.lax.rsqrt(deg), 0.0)              # D^{-1/2}

    edge_vals = d[src] * edge_weight                              # row-scaled
    amax = jnp.maximum(jnp.max(jnp.abs(edge_vals)), jnp.max(d))
    amax = jnp.maximum(amax, jnp.float32(1e-12))
    a_scale = amax / 127.0

    eq = jnp.clip(jnp.round(edge_vals / a_scale), -127, 127).astype(jnp.int8)
    sq = jnp.clip(jnp.round(d / a_scale), 0, 127).astype(jnp.int8)
    idx = jnp.arange(N)
    a_q = jnp.zeros((Npad, Npad), jnp.int8)
    a_q = a_q.at[src, dst].add(eq)                 # edges (row-scaled, quantized)
    a_q = a_q.at[idx, idx].add(sq)                 # self loops

    # column-side D^{-1/2} with the adjacency dequant scale folded in
    d_pad = jnp.zeros((Npad,), jnp.float32).at[:N].set(d)
    drs = (a_scale * d_pad).reshape(Npad, 1)

    # zero-pad features / params to MXU-friendly (128-lane) widths
    xp = jnp.zeros((Npad, Fpad), jnp.float32).at[:N, :nfeat].set(x).astype(jnp.bfloat16)
    w1p = jnp.zeros((Fpad, Hpad), jnp.float32).at[:nfeat, :nhid].set(w1).astype(jnp.bfloat16)
    b1p = jnp.zeros((1, Hpad), jnp.float32).at[:, :nhid].set(b1)
    w2p = jnp.zeros((Hpad, Cpad), jnp.float32).at[:nhid, :nclass].set(w2).astype(jnp.bfloat16)
    b2p = jnp.full((1, Cpad), -1e30, jnp.float32).at[:, :nclass].set(b2)

    # ---- kernel 0: P1 = (a_scale * D^{-1/2}) * (X @ W1_pad) ----------------
    bb0 = _block_bytes([((tm, Fpad), jnp.bfloat16), ((Fpad, Hpad), jnp.bfloat16),
                        ((tm, 1), jnp.float32), ((tm, Hpad), jnp.bfloat16)]) * 2
    p1 = pl.pallas_call(
        feat_kernel,
        out_shape=jax.ShapeDtypeStruct((Npad, Hpad), jnp.bfloat16),
        grid=(Npad // tm,),
        in_specs=[pl.BlockSpec((tm, Fpad), lambda i: (i, 0)),
                  pl.BlockSpec((Fpad, Hpad), lambda i: (0, 0)),
                  pl.BlockSpec((tm, 1), lambda i: (i, 0))],
        out_specs=pl.BlockSpec((tm, Hpad), lambda i: (i, 0)),
        compiler_params=pltpu.CompilerParams(
            dimension_semantics=("parallel",),
            vmem_limit_bytes=_vmem_limit(bb0, scoped_cap)),
    )(xp, w1p, drs)

    # ---- kernel 1: layer-1 aggregation (K-tiled) + ReLU + h @ W2 ----------
    bb1 = _k1_block_bytes(tm, tk, Hpad, Cpad)
    q = pl.pallas_call(
        layer1_kernel,
        out_shape=jax.ShapeDtypeStruct((Npad, Cpad), jnp.bfloat16),
        grid=(Npad // tm, Npad // tk),
        in_specs=[pl.BlockSpec((tm, tk), lambda i, k: (i, k)),
                  pl.BlockSpec((tk, Hpad), lambda i, k: (k, 0)),
                  pl.BlockSpec((tm, 1), lambda i, k: (i, 0)),
                  pl.BlockSpec((1, Hpad), lambda i, k: (0, 0)),
                  pl.BlockSpec((Hpad, Cpad), lambda i, k: (0, 0))],
        out_specs=pl.BlockSpec((tm, Cpad), lambda i, k: (i, 0)),
        scratch_shapes=[pltpu.VMEM((tm, Hpad), jnp.float32)],
        compiler_params=pltpu.CompilerParams(
            dimension_semantics=("parallel", "arbitrary"),
            vmem_limit_bytes=_vmem_limit(bb1, scoped_cap)),
    )(a_q, p1, drs, b1p, w2p)

    # ---- kernel 2: layer-2 aggregation (K-tiled) + bias + log_softmax -----
    bb2 = (2 * tm * tk + 2 * tk * Cpad * 2 + 2 * Cpad * 4
           + 2 * tm * Cpad * 4 + tm * Cpad * 4)
    out = pl.pallas_call(
        layer2_kernel,
        out_shape=jax.ShapeDtypeStruct((Npad, Cpad), jnp.float32),
        grid=(Npad // tm, Npad // tk),
        in_specs=[pl.BlockSpec((tm, tk), lambda i, k: (i, k)),
                  pl.BlockSpec((tk, Cpad), lambda i, k: (k, 0)),
                  pl.BlockSpec((1, Cpad), lambda i, k: (0, 0))],
        out_specs=pl.BlockSpec((tm, Cpad), lambda i, k: (i, 0)),
        scratch_shapes=[pltpu.VMEM((tm, Cpad), jnp.float32)],
        compiler_params=pltpu.CompilerParams(
            dimension_semantics=("parallel", "arbitrary"),
            vmem_limit_bytes=_vmem_limit(bb2, scoped_cap)),
    )(a_q, q, b2p)

    return out[:N, :nclass]


def init_params(key, nfeat, nhid, nclass):
    """Deterministic glorot-style init matching GCNConv parameter shapes."""
    k1, k2 = jax.random.split(key)

    def glorot(k, fan_in, fan_out):
        lim = jnp.sqrt(6.0 / (fan_in + fan_out))
        return jax.random.uniform(k, (fan_in, fan_out), jnp.float32, -lim, lim)

    return {
        "w1": glorot(k1, nfeat, nhid),
        "b1": jnp.zeros((nhid,), jnp.float32),
        "w2": glorot(k2, nhid, nclass),
        "b2": jnp.zeros((nclass,), jnp.float32),
    }


if __name__ == "__main__":
    N, nfeat, nhid, nclass = 200, 32, 16, 8   # Npad = 256, tm = tk = 256

    key = jax.random.PRNGKey(0)
    kx, kp, kw = jax.random.split(key, 3)

    x = jax.random.normal(kx, (N, nfeat), jnp.float32)

    # deterministic ring graph, both directions
    src = jnp.arange(N, dtype=jnp.int32)
    dst = (src + 1) % N
    edge_index = jnp.stack(
        [jnp.concatenate([src, dst]), jnp.concatenate([dst, src])], axis=0
    )  # [2, 2N]
    edge_weight = jax.random.uniform(
        kw, (edge_index.shape[1],), jnp.float32, 0.5, 1.5
    )

    params = init_params(kp, nfeat, nhid, nclass)

    out = gcn_attack_forward(x, edge_index, edge_weight, params)
    out = jax.block_until_ready(out)

    # plain-JAX f32 reference (eval-mode forward)
    A = jnp.zeros((N, N), jnp.float32).at[edge_index[0], edge_index[1]].add(edge_weight)
    A = A + jnp.eye(N, dtype=jnp.float32)
    dref = 1.0 / jnp.sqrt(jnp.sum(A, axis=1))
    A_hat = dref[:, None] * A * dref[None, :]
    h_ref = jnp.maximum(A_hat @ (x @ params["w1"]) + params["b1"], 0.0)
    z_ref = A_hat @ (h_ref @ params["w2"]) + params["b2"]
    ref = jax.nn.log_softmax(z_ref, axis=1)

    assert out.shape == (N, nclass)
    # log_softmax rows must sum to ~1 after exp
    assert bool(jnp.allclose(jnp.sum(jnp.exp(out), axis=1), 1.0, atol=1e-3))
    # int8 adjacency + bf16 MXU operands, f32 accumulation -> small drift
    assert bool(jnp.max(jnp.abs(out - ref)) < 0.25)
    print("KERNEL_OK")
</pallas_src>

<mosaic_0001>
module attributes {stable_mosaic.version = 11 : i64} {
  func.func @feat_kernel(%arg0: i32, %arg1: memref<256x128xbf16, #tpu.memory_space<vmem>>, %arg2: memref<128x128xbf16, #tpu.memory_space<vmem>>, %arg3: memref<256x1xf32, #tpu.memory_space<vmem>>, %arg4: memref<256x128xbf16, #tpu.memory_space<vmem>>) attributes {dimension_semantics = [#tpu.dimension_semantics<parallel>], iteration_bounds = array<i64: 1>, scalar_prefetch = 0 : i64, scratch_operands = 0 : i64, tpu.core_type = #tpu.core_type<tc>, window_params = [{transform_indices = @transform_0, window_bounds = array<i64: 256, 128>}, {pipeline_mode = #tpu.pipeline_mode<synchronous>, transform_indices = @transform_1, window_bounds = array<i64: 128, 128>}, {transform_indices = @transform_2, window_bounds = array<i64: 256, 1>}, {transform_indices = @transform_3, window_bounds = array<i64: 256, 128>}]} {
    %c0 = arith.constant 0 : index
    %c0_0 = arith.constant 0 : index
    %0 = vector.load %arg1[%c0, %c0_0] : memref<256x128xbf16, #tpu.memory_space<vmem>>, vector<256x128xbf16>
    %c0_1 = arith.constant 0 : index
    %c0_2 = arith.constant 0 : index
    %1 = vector.load %arg2[%c0_1, %c0_2] : memref<128x128xbf16, #tpu.memory_space<vmem>>, vector<128x128xbf16>
    %cst = arith.constant dense<0.000000e+00> : vector<256x128xf32>
    %2 = tpu.matmul %0, %1, %cst {dimension_numbers = #tpu.dot_dimension_numbers<[1], [0], [0], [1], [0, 0, 1, 1], [], []>} : vector<256x128xbf16>, vector<128x128xbf16>, vector<256x128xf32> -> vector<256x128xf32>
    %c0_3 = arith.constant 0 : index
    %c0_4 = arith.constant 0 : index
    %3 = vector.load %arg3[%c0_3, %c0_4] : memref<256x1xf32, #tpu.memory_space<vmem>>, vector<256x1xf32>
    %4 = vector.broadcast %3 : vector<256x1xf32> to vector<256x128xf32>
    %5 = arith.mulf %4, %2 : vector<256x128xf32>
    %6 = arith.truncf %5 : vector<256x128xf32> to vector<256x128xbf16>
    %c0_5 = arith.constant 0 : index
    %c0_6 = arith.constant 0 : index
    %7 = vector.load %arg4[%c0_5, %c0_6] : memref<256x128xbf16, #tpu.memory_space<vmem>>, vector<256x128xbf16>
    tpu.vector_store %arg4[%c0_5, %c0_6], %6 {strides = array<i32>} : memref<256x128xbf16, #tpu.memory_space<vmem>>, vector<256x128xbf16>,
    return
  }
  func.func @transform_0(%arg0: i32) -> (i32, i32) {
    %c0_i32 = arith.constant 0 : i32
    %c0_i32_0 = arith.constant 0 : i32
    return %arg0, %c0_i32 : i32, i32
  }
  func.func @transform_1(%arg0: i32) -> (i32, i32) {
    %c0_i32 = arith.constant 0 : i32
    %c0_i32_0 = arith.constant 0 : i32
    %c0_i32_1 = arith.constant 0 : i32
    return %c0_i32, %c0_i32_0 : i32, i32
  }
  func.func @transform_2(%arg0: i32) -> (i32, i32) {
    %c0_i32 = arith.constant 0 : i32
    %c0_i32_0 = arith.constant 0 : i32
    return %arg0, %c0_i32 : i32, i32
  }
  func.func @transform_3(%arg0: i32) -> (i32, i32) {
    %c0_i32 = arith.constant 0 : i32
    %c0_i32_0 = arith.constant 0 : i32
    return %arg0, %c0_i32 : i32, i32
  }
}

</mosaic_0001>

<llo_original>
// kernel: tpu_custom_call.1
$region0: #{tpu_custom_call.1}
  #allocation0 [shape = 'u32[]', space=smem, size = 0x4, offset = 0x4, fixed_abs, tag = 'smem constant byte address 0x4 - core index']
  #allocation1 [shape = 'u32[144,128]{1,0:T(1,128)}', space=vmem, size = 0x12000, scoped, tag = 'internal scratch']
  %s0 = inlined_call_operand.vmem [shape: bf16[256,128], index: 0, kind: input, shape index: {}]
  %s1 = inlined_call_operand.vmem [shape: bf16[128,128], index: 1, kind: input, shape index: {}]
  %s2 = inlined_call_operand.vmem [shape: f32[256,1], index: 2, kind: input, shape index: {}]
  %s3 = inlined_call_operand.hbm [shape: bf16[256,128], index: 3, kind: output, shape index: {}]
  %s4 = sld [smem:[#allocation0]]
  $region22: #{tpu_custom_call.1} parent=0
    _
  %s6 = ssub.s32 1, %s4
  %s7 = scalar_select 0, %s6, %s4
  $region1: #{tpu_custom_call.1} parent=0
    #allocation2 [shape = 'u8[65536]{0}', space=vmem, size = 0x10000, scoped, tag = 'output window, operand 0, single buffered']
    #allocation3 [shape = 's32[1]{0}', space=sflag, size = 0x4, scoped, tag = 'scoped memory for tpu_custom_call.1']
    %8 = vsyncpa [#allocation3], 0
    // Predicated region
    $region2: #{tpu_custom_call.1} parent=1 // pred_check
      _
    $region3: #{tpu_custom_call.1} parent=1 // pred_check_branch
      %10 = sbr.rel (0) target = $region5
    $region4: #{tpu_custom_call.1} parent=1 // pred_region
      _
    $region5: #{tpu_custom_call.1} parent=1 // pred_fallthru
      _
    // Predicated region
    $region6: #{tpu_custom_call.1} parent=1 // pred_check
      _
    $region7: #{tpu_custom_call.1} parent=1 // pred_check_branch
      %12 = sbr.rel (0) target = $region9
    $region8: #{tpu_custom_call.1} parent=1 // pred_region
      _
    $region9: #{tpu_custom_call.1} parent=1 // pred_fallthru
      _
    // Predicated region
    $region10: #{tpu_custom_call.1} parent=1 // pred_check
      _
    $region11: #{tpu_custom_call.1} parent=1 // pred_check_branch
      %14 = sbr.rel (0) target = $region13
    $region12: #{tpu_custom_call.1} parent=1 // pred_region
      _
    $region13: #{tpu_custom_call.1} parent=1 // pred_fallthru
      _
    %v16 = vld [vmem:[%s0] sm:$0xf]
    %v17 = vld [vmem:[%s0 + $0x4] sm:$0xf]
    %v18 = vld [vmem:[%s0 + $0x8] sm:$0xf]
    %v19 = vld [vmem:[%s0 + $0xc] sm:$0xf]
    %v20 = vld [vmem:[%s0 + $0x10] sm:$0xf]
    %v21 = vld [vmem:[%s0 + $0x14] sm:$0xf]
    %v22 = vld [vmem:[%s0 + $0x18] sm:$0xf]
    %v23 = vld [vmem:[%s0 + $0x1c] sm:$0xf]
    %v24 = vld [vmem:[%s0 + $0x20] sm:$0xf]
    %v25 = vld [vmem:[%s0 + $0x24] sm:$0xf]
    %v26 = vld [vmem:[%s0 + $0x28] sm:$0xf]
    %v27 = vld [vmem:[%s0 + $0x2c] sm:$0xf]
    %v28 = vld [vmem:[%s0 + $0x30] sm:$0xf]
    %v29 = vld [vmem:[%s0 + $0x34] sm:$0xf]
    %v30 = vld [vmem:[%s0 + $0x38] sm:$0xf]
    %v31 = vld [vmem:[%s0 + $0x3c] sm:$0xf]
    %v32 = vld [vmem:[%s0 + $0x40] sm:$0xf]
    %v33 = vld [vmem:[%s0 + $0x44] sm:$0xf]
    %v34 = vld [vmem:[%s0 + $0x48] sm:$0xf]
    %v35 = vld [vmem:[%s0 + $0x4c] sm:$0xf]
    %v36 = vld [vmem:[%s0 + $0x50] sm:$0xf]
    %v37 = vld [vmem:[%s0 + $0x54] sm:$0xf]
    %v38 = vld [vmem:[%s0 + $0x58] sm:$0xf]
    %v39 = vld [vmem:[%s0 + $0x5c] sm:$0xf]
    %v40 = vld [vmem:[%s0 + $0x60] sm:$0xf]
    %v41 = vld [vmem:[%s0 + $0x64] sm:$0xf]
    %v42 = vld [vmem:[%s0 + $0x68] sm:$0xf]
    %v43 = vld [vmem:[%s0 + $0x6c] sm:$0xf]
    %v44 = vld [vmem:[%s0 + $0x70] sm:$0xf]
    %v45 = vld [vmem:[%s0 + $0x74] sm:$0xf]
    %v46 = vld [vmem:[%s0 + $0x78] sm:$0xf]
    %v47 = vld [vmem:[%s0 + $0x7c] sm:$0xf]
    %v48 = vld [vmem:[%s1] sm:$0xf]
    %v49 = vld [vmem:[%s1 + $0x4] sm:$0xf]
    %v50 = vld [vmem:[%s1 + $0x8] sm:$0xf]
    %v51 = vld [vmem:[%s1 + $0xc] sm:$0xf]
    %v52 = vld [vmem:[%s1 + $0x10] sm:$0xf]
    %v53 = vld [vmem:[%s1 + $0x14] sm:$0xf]
    %v54 = vld [vmem:[%s1 + $0x18] sm:$0xf]
    %v55 = vld [vmem:[%s1 + $0x1c] sm:$0xf]
    %v56 = vld [vmem:[%s1 + $0x20] sm:$0xf]
    %v57 = vld [vmem:[%s1 + $0x24] sm:$0xf]
    %v58 = vld [vmem:[%s1 + $0x28] sm:$0xf]
    %v59 = vld [vmem:[%s1 + $0x2c] sm:$0xf]
    %v60 = vld [vmem:[%s1 + $0x30] sm:$0xf]
    %v61 = vld [vmem:[%s1 + $0x34] sm:$0xf]
    %v62 = vld [vmem:[%s1 + $0x38] sm:$0xf]
    %v63 = vld [vmem:[%s1 + $0x3c] sm:$0xf]
    %v96 = vunpack.c.l.b16 %v16
    %v97 = vunpack.c.l.b16 %v17
    %v98 = vunpack.c.l.b16 %v18
    %v99 = vunpack.c.l.b16 %v19
    %v100 = vunpack.c.l.b16 %v20
    %v101 = vunpack.c.l.b16 %v21
    %v102 = vunpack.c.l.b16 %v22
    %v103 = vunpack.c.l.b16 %v23
    %v104 = vunpack.c.l.b16 %v24
    %v105 = vunpack.c.l.b16 %v25
    %v106 = vunpack.c.l.b16 %v26
    %v107 = vunpack.c.l.b16 %v27
    %v108 = vunpack.c.l.b16 %v28
    %v109 = vunpack.c.l.b16 %v29
    %v110 = vunpack.c.l.b16 %v30
    %v111 = vunpack.c.l.b16 %v31
    %v112 = vunpack.c.l.b16 %v32
    %v113 = vunpack.c.l.b16 %v33
    %v114 = vunpack.c.l.b16 %v34
    %v115 = vunpack.c.l.b16 %v35
    %v116 = vunpack.c.l.b16 %v36
    %v117 = vunpack.c.l.b16 %v37
    %v118 = vunpack.c.l.b16 %v38
    %v119 = vunpack.c.l.b16 %v39
    %v120 = vunpack.c.l.b16 %v40
    %v121 = vunpack.c.l.b16 %v41
    %v122 = vunpack.c.l.b16 %v42
    %v123 = vunpack.c.l.b16 %v43
    %v124 = vunpack.c.l.b16 %v44
    %v125 = vunpack.c.l.b16 %v45
    %v126 = vunpack.c.l.b16 %v46
    %v127 = vunpack.c.l.b16 %v47
    %v128 = vpack.c.b16 %v97, %v96
    %v129 = vpack.c.b16 %v99, %v98
    %v130 = vpack.c.b16 %v101, %v100
    %v131 = vpack.c.b16 %v103, %v102
    %v132 = vpack.c.b16 %v105, %v104
    %v133 = vpack.c.b16 %v107, %v106
    %v134 = vpack.c.b16 %v109, %v108
    %v135 = vpack.c.b16 %v111, %v110
    %v136 = vpack.c.b16 %v113, %v112
    %v137 = vpack.c.b16 %v115, %v114
    %v138 = vpack.c.b16 %v117, %v116
    %v139 = vpack.c.b16 %v119, %v118
    %v140 = vpack.c.b16 %v121, %v120
    %v141 = vpack.c.b16 %v123, %v122
    %v142 = vpack.c.b16 %v125, %v124
    %v143 = vpack.c.b16 %v127, %v126
    %v176 = vunpack.c.l.b16 %v48
    %v177 = vunpack.c.l.b16 %v49
    %v178 = vunpack.c.l.b16 %v50
    %v179 = vunpack.c.l.b16 %v51
    %v180 = vunpack.c.l.b16 %v52
    %v181 = vunpack.c.l.b16 %v53
    %v182 = vunpack.c.l.b16 %v54
    %v183 = vunpack.c.l.b16 %v55
    %v184 = vunpack.c.l.b16 %v56
    %v185 = vunpack.c.l.b16 %v57
    %v186 = vunpack.c.l.b16 %v58
    %v187 = vunpack.c.l.b16 %v59
    %v188 = vunpack.c.l.b16 %v60
    %v189 = vunpack.c.l.b16 %v61
    %v190 = vunpack.c.l.b16 %v62
    %v191 = vunpack.c.l.b16 %v63
    %v192 = vpack.c.b16 %v177, %v176
    %v193 = vpack.c.b16 %v179, %v178
    %v194 = vpack.c.b16 %v181, %v180
    %v195 = vpack.c.b16 %v183, %v182
    %v196 = vpack.c.b16 %v185, %v184
    %v197 = vpack.c.b16 %v187, %v186
    %v198 = vpack.c.b16 %v189, %v188
    %v199 = vpack.c.b16 %v191, %v190
    %208 = vmatprep.subr.bf16.mxu0 0
    %209 = vmatpush1.bf16.msra.mxu0 %v192
    %210 = vmatprep.subr.bf16.mxu0 0
    %211 = vmatpush1.bf16.msra.mxu0 %v193
    %212 = vmatprep.subr.bf16.mxu0 0
    %213 = vmatpush1.bf16.msra.mxu0 %v194
    %214 = vmatprep.subr.bf16.mxu0 0
    %215 = vmatpush1.bf16.msra.mxu0 %v195
    %216 = vmatprep.subr.bf16.mxu0 0
    %217 = vmatpush1.bf16.msra.mxu0 %v196
    %218 = vmatprep.subr.bf16.mxu0 0
    %219 = vmatpush1.bf16.msra.mxu0 %v197
    %220 = vmatprep.subr.bf16.mxu0 0
    %221 = vmatpush1.bf16.msra.mxu0 %v198
    %222 = vmatprep.subr.bf16.mxu0 0
    %223 = vmatpush1.bf16.msra.mxu0 %v199
    %224 = vmatprep.subr.bf16.mxu0 0
    %225 = vmatpush1.bf16.msra.mxu0 0
    %226 = vmatprep.subr.bf16.mxu0 0
    %227 = vmatpush1.bf16.msra.mxu0 0
    %228 = vmatprep.subr.bf16.mxu0 0
    %229 = vmatpush1.bf16.msra.mxu0 0
    %230 = vmatprep.subr.bf16.mxu0 0
    %231 = vmatpush1.bf16.msra.mxu0 0
    %232 = vmatprep.subr.bf16.mxu0 0
    %233 = vmatpush1.bf16.msra.mxu0 0
    %234 = vmatprep.subr.bf16.mxu0 0
    %235 = vmatpush1.bf16.msra.mxu0 0
    %236 = vmatprep.subr.bf16.mxu0 0
    %237 = vmatpush1.bf16.msra.mxu0 0
    %238 = vmatprep.subr.bf16.mxu0 0
    %239 = vmatpush1.bf16.msra.mxu0 0
    %240 = vmatprep.mubr.bf16.mxu0 0
    %241 = vmatmul.mubr.bf16.gmra.mrb[0].mxu0 %v128
    %v242 = vpop.f32.mrb[0].mxu0
    %v243 = vadd.f32 0.0, %v242
    %v244 = vpop.f32.mrb[0].mxu0
    %v245 = vpop.f32.mrb[0].mxu0
    %v246 = vadd.f32 0.0, %v245
    %v247 = vpop.f32.mrb[0].mxu0
    %248 = vmatprep.mubr.bf16.mxu0 0
    %249 = vmatmul.mubr.bf16.gmra.mrb[0].mxu0 %v129
    %v250 = vpop.f32.mrb[0].mxu0
    %v251 = vadd.f32 0.0, %v250
    %v252 = vpop.f32.mrb[0].mxu0
    %v253 = vpop.f32.mrb[0].mxu0
    %v254 = vadd.f32 0.0, %v253
    %v255 = vpop.f32.mrb[0].mxu0
    %256 = vmatprep.mubr.bf16.mxu0 0
    %257 = vmatmul.mubr.bf16.gmra.mrb[0].mxu0 %v130
    %v258 = vpop.f32.mrb[0].mxu0
    %v259 = vadd.f32 0.0, %v258
    %v260 = vpop.f32.mrb[0].mxu0
    %v261 = vpop.f32.mrb[0].mxu0
    %v262 = vadd.f32 0.0, %v261
    %v263 = vpop.f32.mrb[0].mxu0
    %264 = vmatprep.mubr.bf16.mxu0 0
    %265 = vmatmul.mubr.bf16.gmra.mrb[0].mxu0 %v131
    %v266 = vpop.f32.mrb[0].mxu0
    %v267 = vadd.f32 0.0, %v266
    %v268 = vpop.f32.mrb[0].mxu0
    %v269 = vpop.f32.mrb[0].mxu0
    %v270 = vadd.f32 0.0, %v269
    %v271 = vpop.f32.mrb[0].mxu0
    %272 = vmatprep.mubr.bf16.mxu0 0
    %273 = vmatmul.mubr.bf16.gmra.mrb[0].mxu0 %v132
    %v274 = vpop.f32.mrb[0].mxu0
    %v275 = vadd.f32 0.0, %v274
    %v276 = vpop.f32.mrb[0].mxu0
    %v277 = vpop.f32.mrb[0].mxu0
    %v278 = vadd.f32 0.0, %v277
    %v279 = vpop.f32.mrb[0].mxu0
    %280 = vmatprep.mubr.bf16.mxu0 0
    %281 = vmatmul.mubr.bf16.gmra.mrb[0].mxu0 %v133
    %v282 = vpop.f32.mrb[0].mxu0
    %v283 = vadd.f32 0.0, %v282
    %v284 = vpop.f32.mrb[0].mxu0
    %v285 = vpop.f32.mrb[0].mxu0
    %v286 = vadd.f32 0.0, %v285
    %v287 = vpop.f32.mrb[0].mxu0
    %288 = vmatprep.mubr.bf16.mxu0 0
    %289 = vmatmul.mubr.bf16.gmra.mrb[0].mxu0 %v134
    %v290 = vpop.f32.mrb[0].mxu0
    %v291 = vadd.f32 0.0, %v290
    %v292 = vpop.f32.mrb[0].mxu0
    %v293 = vpop.f32.mrb[0].mxu0
    %v294 = vadd.f32 0.0, %v293
    %v295 = vpop.f32.mrb[0].mxu0
    %296 = vmatprep.mubr.bf16.mxu0 0
    %297 = vmatmul.mubr.bf16.gmra.mrb[0].mxu0 %v135
    %v298 = vpop.f32.mrb[0].mxu0
    %v299 = vadd.f32 0.0, %v298
    %v300 = vpop.f32.mrb[0].mxu0
    %v301 = vpop.f32.mrb[0].mxu0
    %v302 = vadd.f32 0.0, %v301
    %v303 = vpop.f32.mrb[0].mxu0
    %304 = vmatprep.mubr.bf16.mxu0 0
    %305 = vmatmul.mubr.bf16.gmra.mrb[0].mxu0 %v136
    %v306 = vpop.f32.mrb[0].mxu0
    %v307 = vadd.f32 0.0, %v306
    %v308 = vpop.f32.mrb[0].mxu0
    %v309 = vpop.f32.mrb[0].mxu0
    %v310 = vadd.f32 0.0, %v309
    %v311 = vpop.f32.mrb[0].mxu0
    %312 = vmatprep.mubr.bf16.mxu0 0
    %313 = vmatmul.mubr.bf16.gmra.mrb[0].mxu0 %v137
    %v314 = vpop.f32.mrb[0].mxu0
    %v315 = vadd.f32 0.0, %v314
    %v316 = vpop.f32.mrb[0].mxu0
    %v317 = vpop.f32.mrb[0].mxu0
    %v318 = vadd.f32 0.0, %v317
    %v319 = vpop.f32.mrb[0].mxu0
    %320 = vmatprep.mubr.bf16.mxu0 0
    %321 = vmatmul.mubr.bf16.gmra.mrb[0].mxu0 %v138
    %v322 = vpop.f32.mrb[0].mxu0
    %v323 = vadd.f32 0.0, %v322
    %v324 = vpop.f32.mrb[0].mxu0
    %v325 = vpop.f32.mrb[0].mxu0
    %v326 = vadd.f32 0.0, %v325
    %v327 = vpop.f32.mrb[0].mxu0
    %328 = vmatprep.mubr.bf16.mxu0 0
    %329 = vmatmul.mubr.bf16.gmra.mrb[0].mxu0 %v139
    %v330 = vpop.f32.mrb[0].mxu0
    %v331 = vadd.f32 0.0, %v330
    %v332 = vpop.f32.mrb[0].mxu0
    %v333 = vpop.f32.mrb[0].mxu0
    %v334 = vadd.f32 0.0, %v333
    %v335 = vpop.f32.mrb[0].mxu0
    %336 = vmatprep.mubr.bf16.mxu0 0
    %337 = vmatmul.mubr.bf16.gmra.mrb[0].mxu0 %v140
    %v338 = vpop.f32.mrb[0].mxu0
    %v339 = vadd.f32 0.0, %v338
    %v340 = vpop.f32.mrb[0].mxu0
    %v341 = vpop.f32.mrb[0].mxu0
    %v342 = vadd.f32 0.0, %v341
    %v343 = vpop.f32.mrb[0].mxu0
    %344 = vmatprep.mubr.bf16.mxu0 0
    %345 = vmatmul.mubr.bf16.gmra.mrb[0].mxu0 %v141
    %v346 = vpop.f32.mrb[0].mxu0
    %v347 = vadd.f32 0.0, %v346
    %v348 = vpop.f32.mrb[0].mxu0
    %v349 = vpop.f32.mrb[0].mxu0
    %v350 = vadd.f32 0.0, %v349
    %v351 = vpop.f32.mrb[0].mxu0
    %352 = vmatprep.mubr.bf16.mxu0 0
    %353 = vmatmul.mubr.bf16.gmra.mrb[0].mxu0 %v142
    %v354 = vpop.f32.mrb[0].mxu0
    %v355 = vadd.f32 0.0, %v354
    %v356 = vpop.f32.mrb[0].mxu0
    %v357 = vpop.f32.mrb[0].mxu0
    %v358 = vadd.f32 0.0, %v357
    %v359 = vpop.f32.mrb[0].mxu0
    %360 = vmatprep.mubr.bf16.mxu0 0
    %361 = vmatmul.mubr.bf16.gmra.mrb[0].mxu0 %v143
    %v362 = vpop.f32.mrb[0].mxu0
    %v363 = vadd.f32 0.0, %v362
    %v364 = vpop.f32.mrb[0].mxu0
    %v365 = vpop.f32.mrb[0].mxu0
    %v366 = vadd.f32 0.0, %v365
    %v367 = vpop.f32.mrb[0].mxu0
    %368 = vdwg.mxu0
    %v369 = vld [vmem:[%s2] sm:$0xff]
    %v370 = vld [vmem:[%s2 + $0x8] sm:$0xff]
    %v371 = vld [vmem:[%s2 + $0x10] sm:$0xff]
    %v372 = vld [vmem:[%s2 + $0x18] sm:$0xff]
    %v373 = vld [vmem:[%s2 + $0x20] sm:$0xff]
    %v374 = vld [vmem:[%s2 + $0x28] sm:$0xff]
    %v375 = vld [vmem:[%s2 + $0x30] sm:$0xff]
    %v376 = vld [vmem:[%s2 + $0x38] sm:$0xff]
    %v377 = vld [vmem:[%s2 + $0x40] sm:$0xff]
    %v378 = vld [vmem:[%s2 + $0x48] sm:$0xff]
    %v379 = vld [vmem:[%s2 + $0x50] sm:$0xff]
    %v380 = vld [vmem:[%s2 + $0x58] sm:$0xff]
    %v381 = vld [vmem:[%s2 + $0x60] sm:$0xff]
    %v382 = vld [vmem:[%s2 + $0x68] sm:$0xff]
    %v383 = vld [vmem:[%s2 + $0x70] sm:$0xff]
    %v384 = vld [vmem:[%s2 + $0x78] sm:$0xff]
    %v385 = vld [vmem:[%s2 + $0x80] sm:$0xff]
    %v386 = vld [vmem:[%s2 + $0x88] sm:$0xff]
    %v387 = vld [vmem:[%s2 + $0x90] sm:$0xff]
    %v388 = vld [vmem:[%s2 + $0x98] sm:$0xff]
    %v389 = vld [vmem:[%s2 + $0xa0] sm:$0xff]
    %v390 = vld [vmem:[%s2 + $0xa8] sm:$0xff]
    %v391 = vld [vmem:[%s2 + $0xb0] sm:$0xff]
    %v392 = vld [vmem:[%s2 + $0xb8] sm:$0xff]
    %v393 = vld [vmem:[%s2 + $0xc0] sm:$0xff]
    %v394 = vld [vmem:[%s2 + $0xc8] sm:$0xff]
    %v395 = vld [vmem:[%s2 + $0xd0] sm:$0xff]
    %v396 = vld [vmem:[%s2 + $0xd8] sm:$0xff]
    %v397 = vld [vmem:[%s2 + $0xe0] sm:$0xff]
    %v398 = vld [vmem:[%s2 + $0xe8] sm:$0xff]
    %v399 = vld [vmem:[%s2 + $0xf0] sm:$0xff]
    %v400 = vld [vmem:[%s2 + $0xf8] sm:$0xff]
    %402 = vset.pattern.permute.xlu0 0
    %403 = vperm.xlu0 %402, %v369
    %v404 = vpop.permute.xlu0 %403
    %407 = vset.pattern.permute.xlu0 0
    %408 = vperm.xlu0 %407, %v370
    %v409 = vpop.permute.xlu0 %408
    %412 = vset.pattern.permute.xlu0 0
    %413 = vperm.xlu0 %412, %v371
    %v414 = vpop.permute.xlu0 %413
    %417 = vset.pattern.permute.xlu0 0
    %418 = vperm.xlu0 %417, %v372
    %v419 = vpop.permute.xlu0 %418
    %422 = vset.pattern.permute.xlu0 0
    %423 = vperm.xlu0 %422, %v373
    %v424 = vpop.permute.xlu0 %423
    %427 = vset.pattern.permute.xlu0 0
    %428 = vperm.xlu0 %427, %v374
    %v429 = vpop.permute.xlu0 %428
    %432 = vset.pattern.permute.xlu0 0
    %433 = vperm.xlu0 %432, %v375
    %v434 = vpop.permute.xlu0 %433
    %437 = vset.pattern.permute.xlu0 0
    %438 = vperm.xlu0 %437, %v376
    %v439 = vpop.permute.xlu0 %438
    %442 = vset.pattern.permute.xlu0 0
    %443 = vperm.xlu0 %442, %v377
    %v444 = vpop.permute.xlu0 %443
    %447 = vset.pattern.permute.xlu0 0
    %448 = vperm.xlu0 %447, %v378
    %v449 = vpop.permute.xlu0 %448
    %452 = vset.pattern.permute.xlu0 0
    %453 = vperm.xlu0 %452, %v379
    %v454 = vpop.permute.xlu0 %453
    %457 = vset.pattern.permute.xlu0 0
    %458 = vperm.xlu0 %457, %v380
    %v459 = vpop.permute.xlu0 %458
    %462 = vset.pattern.permute.xlu0 0
    %463 = vperm.xlu0 %462, %v381
    %v464 = vpop.permute.xlu0 %463
    %467 = vset.pattern.permute.xlu0 0
    %468 = vperm.xlu0 %467, %v382
    %v469 = vpop.permute.xlu0 %468
    %472 = vset.pattern.permute.xlu0 0
    %473 = vperm.xlu0 %472, %v383
    %v474 = vpop.permute.xlu0 %473
    %477 = vset.pattern.permute.xlu0 0
    %478 = vperm.xlu0 %477, %v384
    %v479 = vpop.permute.xlu0 %478
    %482 = vset.pattern.permute.xlu0 0
    %483 = vperm.xlu0 %482, %v385
    %v484 = vpop.permute.xlu0 %483
    %487 = vset.pattern.permute.xlu0 0
    %488 = vperm.xlu0 %487, %v386
    %v489 = vpop.permute.xlu0 %488
    %492 = vset.pattern.permute.xlu0 0
    %493 = vperm.xlu0 %492, %v387
    %v494 = vpop.permute.xlu0 %493
    %497 = vset.pattern.permute.xlu0 0
    %498 = vperm.xlu0 %497, %v388
    %v499 = vpop.permute.xlu0 %498
    %502 = vset.pattern.permute.xlu0 0
    %503 = vperm.xlu0 %502, %v389
    %v504 = vpop.permute.xlu0 %503
    %507 = vset.pattern.permute.xlu0 0
    %508 = vperm.xlu0 %507, %v390
    %v509 = vpop.permute.xlu0 %508
    %512 = vset.pattern.permute.xlu0 0
    %513 = vperm.xlu0 %512, %v391
    %v514 = vpop.permute.xlu0 %513
    %517 = vset.pattern.permute.xlu0 0
    %518 = vperm.xlu0 %517, %v392
    %v519 = vpop.permute.xlu0 %518
    %522 = vset.pattern.permute.xlu0 0
    %523 = vperm.xlu0 %522, %v393
    %v524 = vpop.permute.xlu0 %523
    %527 = vset.pattern.permute.xlu0 0
    %528 = vperm.xlu0 %527, %v394
    %v529 = vpop.permute.xlu0 %528
    %532 = vset.pattern.permute.xlu0 0
    %533 = vperm.xlu0 %532, %v395
    %v534 = vpop.permute.xlu0 %533
    %537 = vset.pattern.permute.xlu0 0
    %538 = vperm.xlu0 %537, %v396
    %v539 = vpop.permute.xlu0 %538
    %542 = vset.pattern.permute.xlu0 0
    %543 = vperm.xlu0 %542, %v397
    %v544 = vpop.permute.xlu0 %543
    %547 = vset.pattern.permute.xlu0 0
    %548 = vperm.xlu0 %547, %v398
    %v549 = vpop.permute.xlu0 %548
    %552 = vset.pattern.permute.xlu0 0
    %553 = vperm.xlu0 %552, %v399
    %v554 = vpop.permute.xlu0 %553
    %557 = vset.pattern.permute.xlu0 0
    %558 = vperm.xlu0 %557, %v400
    %v559 = vpop.permute.xlu0 %558
    %v561 = vmul.f32 %v404, %v243
    %v562 = vmul.f32 %v409, %v246
    %v563 = vmul.f32 %v414, %v251
    %v564 = vmul.f32 %v419, %v254
    %v565 = vmul.f32 %v424, %v259
    %v566 = vmul.f32 %v429, %v262
    %v567 = vmul.f32 %v434, %v267
    %v568 = vmul.f32 %v439, %v270
    %v569 = vmul.f32 %v444, %v275
    %v570 = vmul.f32 %v449, %v278
    %v571 = vmul.f32 %v454, %v283
    %v572 = vmul.f32 %v459, %v286
    %v573 = vmul.f32 %v464, %v291
    %v574 = vmul.f32 %v469, %v294
    %v575 = vmul.f32 %v474, %v299
    %v576 = vmul.f32 %v479, %v302
    %v577 = vmul.f32 %v484, %v307
    %v578 = vmul.f32 %v489, %v310
    %v579 = vmul.f32 %v494, %v315
    %v580 = vmul.f32 %v499, %v318
    %v581 = vmul.f32 %v504, %v323
    %v582 = vmul.f32 %v509, %v326
    %v583 = vmul.f32 %v514, %v331
    %v584 = vmul.f32 %v519, %v334
    %v585 = vmul.f32 %v524, %v339
    %v586 = vmul.f32 %v529, %v342
    %v587 = vmul.f32 %v534, %v347
    %v588 = vmul.f32 %v539, %v350
    %v589 = vmul.f32 %v544, %v355
    %v590 = vmul.f32 %v549, %v358
    %v591 = vmul.f32 %v554, %v363
    %v592 = vmul.f32 %v559, %v366
    %v593 = vpack.c.bf16 %v562, %v561
    %v594 = vpack.c.bf16 %v564, %v563
    %v595 = vpack.c.bf16 %v566, %v565
    %v596 = vpack.c.bf16 %v568, %v567
    %v597 = vpack.c.bf16 %v570, %v569
    %v598 = vpack.c.bf16 %v572, %v571
    %v599 = vpack.c.bf16 %v574, %v573
    %v600 = vpack.c.bf16 %v576, %v575
    %v601 = vpack.c.bf16 %v578, %v577
    %v602 = vpack.c.bf16 %v580, %v579
    %v603 = vpack.c.bf16 %v582, %v581
    %v604 = vpack.c.bf16 %v584, %v583
    %v605 = vpack.c.bf16 %v586, %v585
    %v606 = vpack.c.bf16 %v588, %v587
    %v607 = vpack.c.bf16 %v590, %v589
    %v608 = vpack.c.bf16 %v592, %v591
    %v625 = vunpack.c.l.b16 %v593
    %v626 = vunpack.c.h.b16 %v593
    %v627 = vunpack.c.l.b16 %v594
    %v628 = vunpack.c.h.b16 %v594
    %v629 = vunpack.c.l.b16 %v595
    %v630 = vunpack.c.h.b16 %v595
    %v631 = vunpack.c.l.b16 %v596
    %v632 = vunpack.c.h.b16 %v596
    %v633 = vunpack.c.l.b16 %v597
    %v634 = vunpack.c.h.b16 %v597
    %v635 = vunpack.c.l.b16 %v598
    %v636 = vunpack.c.h.b16 %v598
    %v637 = vunpack.c.l.b16 %v599
    %v638 = vunpack.c.h.b16 %v599
    %v639 = vunpack.c.l.b16 %v600
    %v640 = vunpack.c.h.b16 %v600
    %v641 = vunpack.c.l.b16 %v601
    %v642 = vunpack.c.h.b16 %v601
    %v643 = vunpack.c.l.b16 %v602
    %v644 = vunpack.c.h.b16 %v602
    %v645 = vunpack.c.l.b16 %v603
    %v646 = vunpack.c.h.b16 %v603
    %v647 = vunpack.c.l.b16 %v604
    %v648 = vunpack.c.h.b16 %v604
    %v649 = vunpack.c.l.b16 %v605
    %v650 = vunpack.c.h.b16 %v605
    %v651 = vunpack.c.l.b16 %v606
    %v652 = vunpack.c.h.b16 %v606
    %v653 = vunpack.c.l.b16 %v607
    %v654 = vunpack.c.h.b16 %v607
    %v655 = vunpack.c.l.b16 %v608
    %v656 = vunpack.c.h.b16 %v608
    %v657 = vpack.c.b16 %v625, %v625
    %v658 = vpack.c.b16 %v626, %v626
    %v659 = vpack.c.b16 %v627, %v627
    %v660 = vpack.c.b16 %v628, %v628
    %v661 = vpack.c.b16 %v629, %v629
    %v662 = vpack.c.b16 %v630, %v630
    %v663 = vpack.c.b16 %v631, %v631
    %v664 = vpack.c.b16 %v632, %v632
    %v665 = vpack.c.b16 %v633, %v633
    %v666 = vpack.c.b16 %v634, %v634
    %v667 = vpack.c.b16 %v635, %v635
    %v668 = vpack.c.b16 %v636, %v636
    %v669 = vpack.c.b16 %v637, %v637
    %v670 = vpack.c.b16 %v638, %v638
    %v671 = vpack.c.b16 %v639, %v639
    %v672 = vpack.c.b16 %v640, %v640
    %v673 = vpack.c.b16 %v641, %v641
    %v674 = vpack.c.b16 %v642, %v642
    %v675 = vpack.c.b16 %v643, %v643
    %v676 = vpack.c.b16 %v644, %v644
    %v677 = vpack.c.b16 %v645, %v645
    %v678 = vpack.c.b16 %v646, %v646
    %v679 = vpack.c.b16 %v647, %v647
    %v680 = vpack.c.b16 %v648, %v648
    %v681 = vpack.c.b16 %v649, %v649
    %v682 = vpack.c.b16 %v650, %v650
    %v683 = vpack.c.b16 %v651, %v651
    %v684 = vpack.c.b16 %v652, %v652
    %v685 = vpack.c.b16 %v653, %v653
    %v686 = vpack.c.b16 %v654, %v654
    %v687 = vpack.c.b16 %v655, %v655
    %v688 = vpack.c.b16 %v656, %v656
    %721 = vst [vmem:[#allocation2] sm:$0xf] %v657
    %722 = vst [vmem:[#allocation2 + $0x4] sm:$0xf] %v658
    %723 = vst [vmem:[#allocation2 + $0x8] sm:$0xf] %v659
    %724 = vst [vmem:[#allocation2 + $0xc] sm:$0xf] %v660
    %725 = vst [vmem:[#allocation2 + $0x10] sm:$0xf] %v661
    %726 = vst [vmem:[#allocation2 + $0x14] sm:$0xf] %v662
    %727 = vst [vmem:[#allocation2 + $0x18] sm:$0xf] %v663
    %728 = vst [vmem:[#allocation2 + $0x1c] sm:$0xf] %v664
    %729 = vst [vmem:[#allocation2 + $0x20] sm:$0xf] %v665
    %730 = vst [vmem:[#allocation2 + $0x24] sm:$0xf] %v666
    %731 = vst [vmem:[#allocation2 + $0x28] sm:$0xf] %v667
    %732 = vst [vmem:[#allocation2 + $0x2c] sm:$0xf] %v668
    %733 = vst [vmem:[#allocation2 + $0x30] sm:$0xf] %v669
    %734 = vst [vmem:[#allocation2 + $0x34] sm:$0xf] %v670
    %735 = vst [vmem:[#allocation2 + $0x38] sm:$0xf] %v671
    %736 = vst [vmem:[#allocation2 + $0x3c] sm:$0xf] %v672
    %737 = vst [vmem:[#allocation2 + $0x40] sm:$0xf] %v673
    %738 = vst [vmem:[#allocation2 + $0x44] sm:$0xf] %v674
    %739 = vst [vmem:[#allocation2 + $0x48] sm:$0xf] %v675
    %740 = vst [vmem:[#allocation2 + $0x4c] sm:$0xf] %v676
    %741 = vst [vmem:[#allocation2 + $0x50] sm:$0xf] %v677
    %742 = vst [vmem:[#allocation2 + $0x54] sm:$0xf] %v678
    %743 = vst [vmem:[#allocation2 + $0x58] sm:$0xf] %v679
    %744 = vst [vmem:[#allocation2 + $0x5c] sm:$0xf] %v680
    %745 = vst [vmem:[#allocation2 + $0x60] sm:$0xf] %v681
    %746 = vst [vmem:[#allocation2 + $0x64] sm:$0xf] %v682
    %747 = vst [vmem:[#allocation2 + $0x68] sm:$0xf] %v683
    %748 = vst [vmem:[#allocation2 + $0x6c] sm:$0xf] %v684
    %749 = vst [vmem:[#allocation2 + $0x70] sm:$0xf] %v685
    %750 = vst [vmem:[#allocation2 + $0x74] sm:$0xf] %v686
    %751 = vst [vmem:[#allocation2 + $0x78] sm:$0xf] %v687
    %752 = vst [vmem:[#allocation2 + $0x7c] sm:$0xf] %v688
    // Predicated region
    $region14: #{tpu_custom_call.1} parent=1 // pred_check
      _
    $region15: #{tpu_custom_call.1} parent=1 // pred_check_branch
      %754 = sbr.rel (0) target = $region17
    $region16: #{tpu_custom_call.1} parent=1 // pred_region
      %s756 = ssub.s32 2048, 2048
      %757 = vsyncadd [#allocation3], %s756
      %s758 = sshll.u32 [#allocation2], 4
      %s759 = int_to_ptr.vmem [resolvable:$true] %s758
      %764 = dma.vmem_to_hbm [thread:$0]  %s759, 2048, %s3, [#allocation3], 64, 64, 4
    $region17: #{tpu_custom_call.1} parent=1 // pred_fallthru
      _
    // Predicated region
    $region18: #{tpu_custom_call.1} parent=1 // pred_check
      _
    $region19: #{tpu_custom_call.1} parent=1 // pred_check_branch
      %766 = sbr.rel (0) target = $region21
    $region20: #{tpu_custom_call.1} parent=1 // pred_region
      %767 = dma.done [#allocation3], 2048
    $region21: #{tpu_custom_call.1} parent=1 // pred_fallthru
      _
    %768 = vsyncpa [#allocation3], 1

</llo_original>
